<compile_context>
chip_gen: v7x
topology: tpu7x:2x2x1
jax: 0.10.0
libtpu: 0.0.40
codegen_flags: <defaults>
</compile_context>

<pallas_src>
import functools

import jax
import jax.numpy as jnp
from jax import lax
from jax.experimental import pallas as pl
from jax.experimental.pallas import tpu as pltpu


_LANE = 128
_ACC_ROWS = 8  # f32 accumulator sublane tile


def _round_up(x, m):
    return (x + m - 1) // m * m


def _default_num_cores():
    """2 TensorCores only on v7x; v5e / v6e are single-TC chips."""
    try:
        kind = jax.devices()[0].device_kind.lower()
    except Exception:
        return 1
    return 2 if ("v7" in kind or "7x" in kind) else 1


def _vmem_budget_bytes():
    """Per-generation VMEM budget for kernel buffers (conservative)."""
    try:
        cap = int(pltpu.get_tpu_info().vmem_capacity_bytes)
    except Exception:
        cap = 64 << 20  # assume the smallest (v7x per-TC) if query fails
    return max(16 << 20, min(cap // 2, 48 << 20))


def _loss_kernel(w_ref, p_ref, t_ref, o_ref, acc_ref, *,
                 rows, rows_per_tile, tiles_per_core, inv_btl):
    """Streaming weighted SSE reduction.

    Grid = (core, tile). Hot loop: load tile, masked diff^2, sublane-group
    reduce into a tiny (8, D) f32 accumulator (pure VPU).  The weight multiply,
    cross-lane reduce and scale run exactly once per core in the finalize.
    """
    c = pl.program_id(0)
    t = pl.program_id(1)

    @pl.when(t == 0)
    def _():
        acc_ref[...] = jnp.zeros_like(acc_ref)

    # Row validity mask: covers (a) the ragged last tile (rows % rows_per_tile)
    # and (b) tiles past the end that were clamped in the index_map.
    raw_tile = c * tiles_per_core + t
    row_start = raw_tile * rows_per_tile
    valid_rows = rows - row_start                      # scalar, may be <= 0
    row_ids = lax.broadcasted_iota(jnp.int32, p_ref.shape, 0)
    mask = row_ids < valid_rows

    # Upcast after load so bf16 inputs only cost bf16 HBM traffic.
    diff = p_ref[...].astype(jnp.float32) - t_ref[...].astype(jnp.float32)
    diff = jnp.where(mask, diff, 0.0)
    sq = diff * diff                                   # (R, D)

    # Per-tile sublane-group reduction -> fixed small accumulator (8, D).
    d = sq.shape[-1]
    acc_ref[...] += sq.reshape(rows_per_tile // _ACC_ROWS, _ACC_ROWS, d).sum(axis=0)

    @pl.when(t == tiles_per_core - 1)
    def _():
        col = jnp.sum(acc_ref[...], axis=0, keepdims=True)    # (1, D)
        val = inv_btl * jnp.sum(col * w_ref[...])             # weight applied once
        o_ref[...] = jnp.full(o_ref.shape, val, dtype=o_ref.dtype)


def pallas_loss(predict, target, sj, wj, steps, T=1, *,
                block_bytes=None, num_cores=None):
    """Computes Loss.forward with a tiled, pipelined Pallas reduction kernel."""
    B, L, D = predict.shape
    F = sj.shape[0]
    assert D == F * steps, "last dim of predict must be len_features * steps"
    assert target.shape == predict.shape

    itemsize = jnp.dtype(predict.dtype).itemsize
    sub = max(8, 32 // itemsize)            # dtype sublane multiple: 8/16/32
    lanes = _round_up(D, _LANE)             # VMEM lane footprint per row

    if num_cores is None:
        num_cores = _default_num_cores()

    vmem_budget = _vmem_budget_bytes()
    if block_bytes is None:
        # 2 inputs x 2 buffers + scratch/slack  ->  ~budget/6 per input block.
        block_bytes = vmem_budget // 6

    rows = B * L
    rows_per_tile = max(sub, (block_bytes // (lanes * itemsize)) // sub * sub)
    rows_per_tile = min(rows_per_tile, _round_up(rows, sub))

    total_tiles = pl.cdiv(rows, rows_per_tile)
    num_cores = max(1, min(num_cores, total_tiles))
    tiles_per_core = pl.cdiv(total_tiles, num_cores)

    # Layout-preserving reshape: merge leading dims only (minor dim unchanged),
    # so no relayout / extra HBM pass.  No padding — ragged tail is masked
    # inside the kernel.
    p2 = predict.reshape(rows, D)
    t2 = target.reshape(rows, D)

    # Combined pre-tiled weight row (== torch .repeat along features), applied
    # once per core in the finalize.
    w_vec = sj.astype(jnp.float32) * wj.astype(jnp.float32)   # (F,)
    w_row = jnp.tile(w_vec, steps).reshape(1, D)               # (1, D)

    inv_btl = 1.0 / float(B * T * L)
    kernel = functools.partial(
        _loss_kernel,
        rows=rows, rows_per_tile=rows_per_tile,
        tiles_per_core=tiles_per_core, inv_btl=inv_btl)

    def data_index_map(c, t):
        # Clamp so the (at most num_cores-1) tiles past the end re-read the
        # last valid block; their contribution is masked to zero in-kernel.
        return (jnp.minimum(c * tiles_per_core + t, total_tiles - 1), 0)

    data_spec = pl.BlockSpec((rows_per_tile, D), data_index_map)

    cost = pl.CostEstimate(
        flops=3 * rows * D + 2 * D,
        transcendentals=0,
        bytes_accessed=2 * rows * D * itemsize + 4 * D + num_cores * 8 * _LANE * 4)

    out = pl.pallas_call(
        kernel,
        out_shape=jax.ShapeDtypeStruct((num_cores, 8, _LANE), jnp.float32),
        grid_spec=pltpu.PrefetchScalarGridSpec(
            num_scalar_prefetch=0,
            grid=(num_cores, tiles_per_core),
            in_specs=[
                pl.BlockSpec((1, D), lambda c, t: (0, 0)),   # weights (resident)
                data_spec,                                   # predict tiles
                data_spec,                                   # target tiles
            ],
            out_specs=pl.BlockSpec((1, 8, _LANE), lambda c, t: (c, 0, 0)),
            scratch_shapes=[pltpu.VMEM((_ACC_ROWS, D), jnp.float32)],
        ),
        compiler_params=pltpu.CompilerParams(
            dimension_semantics=("parallel", "arbitrary"),
            vmem_limit_bytes=vmem_budget),
        cost_estimate=cost,
    )(w_row, p2, t2)

    return jnp.sum(out[:, 0, 0])             # add the per-core partial sums


def _reference_loss(predict, target, sj, wj, steps, T=1):
    B, L, _ = predict.shape
    sj_rep = jnp.tile(sj.reshape(1, 1, -1), (1, 1, steps)).astype(jnp.float32)
    wj_rep = jnp.tile(wj.reshape(1, 1, -1), (1, 1, steps)).astype(jnp.float32)
    diff = predict.astype(jnp.float32) - target.astype(jnp.float32)
    return (1.0 / (B * T * L)) * jnp.sum(sj_rep * wj_rep * diff * diff)


if __name__ == "__main__":
    key = jax.random.PRNGKey(0)
    k1, k2, k3, k4, k5, k6, k7, k8 = jax.random.split(key, 8)

    len_features, steps = 4, 4
    D = len_features * steps
    sj = jax.random.uniform(k1, (len_features,), dtype=jnp.float32)
    wj = jax.random.uniform(k2, (len_features,), dtype=jnp.float32)

    # ---- Test 1: small f32 shapes, single tile, single core ----------------
    B, L = 2, 8
    predict = jax.random.normal(k3, (B, L, D), dtype=jnp.float32)
    target = jax.random.normal(k4, (B, L, D), dtype=jnp.float32)
    loss = pallas_loss(predict, target, sj, wj, steps, T=1)
    jax.block_until_ready(loss)
    ref = _reference_loss(predict, target, sj, wj, steps, T=1)
    assert abs(float(loss) - float(ref)) < 1e-4 * max(1.0, abs(float(ref))), (
        float(loss), float(ref))

    # ---- Test 2: bf16 inputs + small block cap -> multi-tile pipeline
    # (init / accumulate / finalize path, 16-row sublane multiple) -----------
    B2, L2 = 2, 512
    predict2 = jax.random.normal(k5, (B2, L2, D), dtype=jnp.bfloat16)
    target2 = jax.random.normal(k6, (B2, L2, D), dtype=jnp.bfloat16)
    loss2 = pallas_loss(predict2, target2, sj, wj, steps, T=1,
                        block_bytes=16 * 1024)
    jax.block_until_ready(loss2)
    ref2 = _reference_loss(predict2, target2, sj, wj, steps, T=1)
    assert abs(float(loss2) - float(ref2)) < 1e-3 * max(1.0, abs(float(ref2))), (
        float(loss2), float(ref2))

    # ---- Test 3: ragged row count + forced 2-core split (odd tile count,
    # exercises the clamped/masked tile path and the in-kernel tail mask) ----
    B3, L3 = 3, 90           # rows = 270, rows_per_tile = 32 -> 9 tiles
    predict3 = jax.random.normal(k7, (B3, L3, D), dtype=jnp.float32)
    target3 = jax.random.normal(k8, (B3, L3, D), dtype=jnp.float32)
    loss3 = pallas_loss(predict3, target3, sj, wj, steps, T=1,
                        block_bytes=16 * 1024, num_cores=2)
    jax.block_until_ready(loss3)
    ref3 = _reference_loss(predict3, target3, sj, wj, steps, T=1)
    assert abs(float(loss3) - float(ref3)) < 1e-4 * max(1.0, abs(float(ref3))), (
        float(loss3), float(ref3))

    print("KERNEL_OK")
</pallas_src>

<mosaic_0001>
module attributes {stable_mosaic.version = 11 : i64} {
  func.func @_loss_kernel(%arg0: i32, %arg1: i32, %arg2: memref<1x16xf32, #tpu.memory_space<vmem>>, %arg3: memref<16x16xf32, #tpu.memory_space<vmem>>, %arg4: memref<16x16xf32, #tpu.memory_space<vmem>>, %arg5: memref<1x8x128xf32, #tpu.memory_space<vmem>>, %arg6: memref<8x16xf32, #tpu.memory_space<vmem>>) attributes {dimension_semantics = [#tpu.dimension_semantics<parallel>, #tpu.dimension_semantics<arbitrary>], iteration_bounds = array<i64: 1, 1>, scalar_prefetch = 0 : i64, scratch_operands = 1 : i64, tpu.core_type = #tpu.core_type<tc>, window_params = [{pipeline_mode = #tpu.pipeline_mode<synchronous>, transform_indices = @transform_0, window_bounds = array<i64: 1, 16>}, {transform_indices = @transform_1, window_bounds = array<i64: 16, 16>}, {transform_indices = @transform_2, window_bounds = array<i64: 16, 16>}, {transform_indices = @transform_3, window_bounds = array<i64: 1, 8, 128>}]} {
    %c0_i32 = arith.constant 0 : i32
    %0 = arith.cmpi eq, %arg1, %c0_i32 : i32
    %1 = arith.extui %0 : i1 to i32
    %c0_i32_0 = arith.constant 0 : i32
    %2 = arith.cmpi ne, %1, %c0_i32_0 : i32
    scf.if %2 {
      %cst_12 = arith.constant 0.000000e+00 : f32
      %24 = vector.broadcast %cst_12 : f32 to vector<8x16xf32>
      %c0_13 = arith.constant 0 : index
      %c0_14 = arith.constant 0 : index
      %25 = vector.load %arg6[%c0_13, %c0_14] : memref<8x16xf32, #tpu.memory_space<vmem>>, vector<8x16xf32>
      tpu.vector_store %arg6[%c0_13, %c0_14], %24 {strides = array<i32>} : memref<8x16xf32, #tpu.memory_space<vmem>>, vector<8x16xf32>,
    } else {
    }
    %c1_i32 = arith.constant 1 : i32
    %3 = arith.muli %arg0, %c1_i32 : i32
    %4 = arith.addi %3, %arg1 : i32
    %c16_i32 = arith.constant 16 : i32
    %5 = arith.muli %4, %c16_i32 : i32
    %c16_i32_1 = arith.constant 16 : i32
    %6 = arith.subi %c16_i32_1, %5 : i32
    %7 = tpu.iota {dimensions = array<i32: 0>} : vector<16x16xi32>
    %8 = vector.broadcast %6 : i32 to vector<16x16xi32>
    %9 = arith.cmpi slt, %7, %8 : vector<16x16xi32>
    %c0 = arith.constant 0 : index
    %c0_2 = arith.constant 0 : index
    %10 = vector.load %arg3[%c0, %c0_2] : memref<16x16xf32, #tpu.memory_space<vmem>>, vector<16x16xf32>
    %c0_3 = arith.constant 0 : index
    %c0_4 = arith.constant 0 : index
    %11 = vector.load %arg4[%c0_3, %c0_4] : memref<16x16xf32, #tpu.memory_space<vmem>>, vector<16x16xf32>
    %12 = arith.subf %10, %11 : vector<16x16xf32>
    %cst = arith.constant 0.000000e+00 : f32
    %13 = vector.broadcast %cst : f32 to vector<16x16xf32>
    %14 = arith.select %9, %12, %13 : vector<16x16xi1>, vector<16x16xf32>
    %15 = arith.mulf %14, %14 : vector<16x16xf32>
    %c0_5 = arith.constant 0 : index
    %c0_6 = arith.constant 0 : index
    %16 = vector.load %arg6[%c0_5, %c0_6] : memref<8x16xf32, #tpu.memory_space<vmem>>, vector<8x16xf32>
    %17 = vector.shape_cast %15 : vector<16x16xf32> to vector<2x8x16xf32>
    %cst_7 = arith.constant dense<0.000000e+00> : vector<8x16xf32>
    %18 = vector.multi_reduction <add>, %17, %cst_7 [0] : vector<2x8x16xf32> to vector<8x16xf32>
    %19 = arith.addf %16, %18 : vector<8x16xf32>
    %c0_8 = arith.constant 0 : index
    %c0_9 = arith.constant 0 : index
    %20 = vector.load %arg6[%c0_8, %c0_9] : memref<8x16xf32, #tpu.memory_space<vmem>>, vector<8x16xf32>
    tpu.vector_store %arg6[%c0_8, %c0_9], %19 {strides = array<i32>} : memref<8x16xf32, #tpu.memory_space<vmem>>, vector<8x16xf32>,
    %c0_i32_10 = arith.constant 0 : i32
    %21 = arith.cmpi eq, %arg1, %c0_i32_10 : i32
    %22 = arith.extui %21 : i1 to i32
    %c0_i32_11 = arith.constant 0 : i32
    %23 = arith.cmpi ne, %22, %c0_i32_11 : i32
    scf.if %23 {
      %c0_12 = arith.constant 0 : index
      %c0_13 = arith.constant 0 : index
      %24 = vector.load %arg6[%c0_12, %c0_13] : memref<8x16xf32, #tpu.memory_space<vmem>>, vector<8x16xf32>
      %cst_14 = arith.constant dense<0.000000e+00> : vector<16xf32>
      %25 = vector.multi_reduction <add>, %24, %cst_14 [0] : vector<8x16xf32> to vector<16xf32>
      %26 = vector.shape_cast %25 : vector<16xf32> to vector<1x16xf32>
      %c0_15 = arith.constant 0 : index
      %c0_16 = arith.constant 0 : index
      %27 = vector.load %arg2[%c0_15, %c0_16] : memref<1x16xf32, #tpu.memory_space<vmem>>, vector<1x16xf32>
      %28 = arith.mulf %26, %27 : vector<1x16xf32>
      %29 = vector.shape_cast %28 : vector<1x16xf32> to vector<1x1x16xf32>
      %cst_17 = arith.constant dense<0.000000e+00> : vector<1xf32>
      %30 = vector.multi_reduction <add>, %29, %cst_17 [1, 2] : vector<1x1x16xf32> to vector<1xf32>
      %31 = vector.shape_cast %30 : vector<1xf32> to vector<1x1x1xf32>
      %32 = vector.extract %31[0, 0, 0] : f32 from vector<1x1x1xf32>
      %cst_18 = arith.constant 6.250000e-02 : f32
      %33 = arith.mulf %cst_18, %32 : f32
      %34 = vector.broadcast %33 : f32 to vector<1x8x128xf32>
      %c0_19 = arith.constant 0 : index
      %c0_20 = arith.constant 0 : index
      %c0_21 = arith.constant 0 : index
      %35 = vector.load %arg5[%c0_19, %c0_20, %c0_21] : memref<1x8x128xf32, #tpu.memory_space<vmem>>, vector<1x8x128xf32>
      tpu.vector_store %arg5[%c0_19, %c0_20, %c0_21], %34 {strides = array<i32>} : memref<1x8x128xf32, #tpu.memory_space<vmem>>, vector<1x8x128xf32>,
    } else {
    }
    return
  }
  func.func @transform_0(%arg0: i32, %arg1: i32) -> (i32, i32) {
    %c0_i32 = arith.constant 0 : i32
    %c0_i32_0 = arith.constant 0 : i32
    %c0_i32_1 = arith.constant 0 : i32
    return %c0_i32, %c0_i32_0 : i32, i32
  }
  func.func @transform_1(%arg0: i32, %arg1: i32) -> (i32, i32) {
    %c1_i32 = arith.constant 1 : i32
    %0 = arith.muli %arg0, %c1_i32 : i32
    %1 = arith.addi %0, %arg1 : i32
    %c0_i32 = arith.constant 0 : i32
    %2 = arith.minsi %1, %c0_i32 : i32
    %c0_i32_0 = arith.constant 0 : i32
    %c0_i32_1 = arith.constant 0 : i32
    return %2, %c0_i32_0 : i32, i32
  }
  func.func @transform_2(%arg0: i32, %arg1: i32) -> (i32, i32) {
    %c1_i32 = arith.constant 1 : i32
    %0 = arith.muli %arg0, %c1_i32 : i32
    %1 = arith.addi %0, %arg1 : i32
    %c0_i32 = arith.constant 0 : i32
    %2 = arith.minsi %1, %c0_i32 : i32
    %c0_i32_0 = arith.constant 0 : i32
    %c0_i32_1 = arith.constant 0 : i32
    return %2, %c0_i32_0 : i32, i32
  }
  func.func @transform_3(%arg0: i32, %arg1: i32) -> (i32, i32, i32) {
    %c0_i32 = arith.constant 0 : i32
    %c0_i32_0 = arith.constant 0 : i32
    %c0_i32_1 = arith.constant 0 : i32
    return %arg0, %c0_i32, %c0_i32_0 : i32, i32, i32
  }
}

</mosaic_0001>

<llo_original>
// kernel: tpu_custom_call.1
$region0: #{tpu_custom_call.1}
  #allocation0 [shape = 'u32[]', space=smem, size = 0x4, offset = 0x4, fixed_abs, tag = 'smem constant byte address 0x4 - core index']
  #allocation1 [shape = 'u32[144,128]{1,0:T(1,128)}', space=vmem, size = 0x12000, scoped, tag = 'internal scratch']
  #allocation2 [shape = 'f32[8,16]{1,0:T(8,128)}', space=vmem, size = 0x1000, scoped, tag = 'scratch operand']
  %s0 = inlined_call_operand.hbm [shape: f32[1,16], index: 0, kind: input, shape index: {}]
  %s1 = inlined_call_operand.hbm [shape: f32[16,16], index: 1, kind: input, shape index: {}]
  %s2 = inlined_call_operand.hbm [shape: f32[16,16], index: 2, kind: input, shape index: {}]
  %s3 = inlined_call_operand.hbm [shape: f32[1,8,128], index: 3, kind: output, shape index: {}]
  %s4 = sld [smem:[#allocation0]]
  $region42: #{tpu_custom_call.1} parent=0
    _
  %s6 = ssub.s32 1, %s4
  %s7 = scalar_select 0, %s6, %s4
  $region1: #{tpu_custom_call.1} parent=0
    #allocation3 [shape = 'u8[512]{0}', space=vmem, size = 0x400, scoped, tag = 'input window, operand 0, single buffered']
    #allocation4 [shape = 's32[1]{0}', space=sflag, size = 0x4, scoped, tag = 'scoped memory for tpu_custom_call.1']
    #allocation5 [shape = 's32[1]{0}', space=sflag, size = 0x4, scoped, tag = 'scoped memory for tpu_custom_call.1']
    #allocation6 [shape = 'u8[8192]{0}', space=vmem, size = 0x2000, scoped, tag = 'input window, operand 1, single buffered']
    #allocation7 [shape = 's32[1]{0}', space=sflag, size = 0x4, scoped, tag = 'scoped memory for tpu_custom_call.1']
    #allocation8 [shape = 'u8[8192]{0}', space=vmem, size = 0x2000, scoped, tag = 'input window, operand 2, single buffered']
    #allocation9 [shape = 'u8[4096]{0}', space=vmem, size = 0x1000, scoped, tag = 'output window, operand 0, single buffered']
    %8 = vsyncpa [#allocation4], 0
    %9 = vsyncpa [#allocation7], 0
    %10 = vsyncpa [#allocation5], 0
    // Predicated region
    $region2: #{tpu_custom_call.1} parent=1 // pred_check
      _
    $region3: #{tpu_custom_call.1} parent=1 // pred_check_branch
      %12 = sbr.rel (0) target = $region5
    $region4: #{tpu_custom_call.1} parent=1 // pred_region
      %s14 = ssub.s32 16, 16
      %15 = vsyncadd [#allocation4], %s14
      %s17 = sshll.u32 [#allocation3], 4
      %s18 = int_to_ptr.vmem [resolvable:$true] %s17
      %20 = dma.hbm_to_vmem [thread:$0]  %s0, 16, %s18, [#allocation4]
    $region5: #{tpu_custom_call.1} parent=1 // pred_fallthru
      _
    // Predicated region
    $region6: #{tpu_custom_call.1} parent=1 // pred_check
      _
    $region7: #{tpu_custom_call.1} parent=1 // pred_check_branch
      %22 = sbr.rel (0) target = $region9
    $region8: #{tpu_custom_call.1} parent=1 // pred_region
      %s23 = sadd.s32 0, 0
      %p24 = scmp.lt.s32.totalorder %s23, 0
      %s25 = scalar_select %p24, %s23, 0
      %s26 = smul.u32 2, %s25
      %s28 = ssub.s32 256, 256
      %29 = vsyncadd [#allocation7], %s28
      %s30 = smul.addr %s26, 128
      %s31 = scalar_lea.hbm %s1, %s30
      %s32 = sshll.u32 [#allocation6], 4
      %s33 = int_to_ptr.vmem [resolvable:$true] %s32
      %38 = dma.hbm_to_vmem [thread:$0]  %s31, 256, %s33, [#allocation7], 128, 128, 8
    $region9: #{tpu_custom_call.1} parent=1 // pred_fallthru
      _
    // Predicated region
    $region10: #{tpu_custom_call.1} parent=1 // pred_check
      _
    $region11: #{tpu_custom_call.1} parent=1 // pred_check_branch
      %40 = sbr.rel (0) target = $region13
    $region12: #{tpu_custom_call.1} parent=1 // pred_region
      %s41 = sadd.s32 0, 0
      %p42 = scmp.lt.s32.totalorder %s41, 0
      %s43 = scalar_select %p42, %s41, 0
      %s44 = smul.u32 2, %s43
      %s46 = ssub.s32 256, 256
      %47 = vsyncadd [#allocation7], %s46
      %s48 = smul.addr %s44, 128
      %s49 = scalar_lea.hbm %s2, %s48
      %s50 = sshll.u32 [#allocation8], 4
      %s51 = int_to_ptr.vmem [resolvable:$true] %s50
      %56 = dma.hbm_to_vmem [thread:$0]  %s49, 256, %s51, [#allocation7], 128, 128, 8
    $region13: #{tpu_custom_call.1} parent=1 // pred_fallthru
      _
    // Predicated region
    $region14: #{tpu_custom_call.1} parent=1 // pred_check
      _
    $region15: #{tpu_custom_call.1} parent=1 // pred_check_branch
      %58 = sbr.rel (0) target = $region17
    $region16: #{tpu_custom_call.1} parent=1 // pred_region
      %59 = dma.done [#allocation4], 16
    $region17: #{tpu_custom_call.1} parent=1 // pred_fallthru
      _
    // Predicated region
    $region18: #{tpu_custom_call.1} parent=1 // pred_check
      _
    $region19: #{tpu_custom_call.1} parent=1 // pred_check_branch
      %61 = sbr.rel (0) target = $region21
    $region20: #{tpu_custom_call.1} parent=1 // pred_region
      %62 = dma.done [#allocation7], 256
    $region21: #{tpu_custom_call.1} parent=1 // pred_fallthru
      _
    // Predicated region
    $region22: #{tpu_custom_call.1} parent=1 // pred_check
      _
    $region23: #{tpu_custom_call.1} parent=1 // pred_check_branch
      %64 = sbr.rel (0) target = $region25
    $region24: #{tpu_custom_call.1} parent=1 // pred_region
      %65 = dma.done [#allocation7], 256
    $region25: #{tpu_custom_call.1} parent=1 // pred_fallthru
      _
    %s66 = sadd.s32 0, 0
    %p67 = scmp.lt.s32.totalorder %s66, 0
    %s68 = scalar_select %p67, %s66, 0
    %s69 = smul.u32 2, %s68
    %s70 = sadd.s32 0, 0
    %p71 = scmp.lt.s32.totalorder %s70, 0
    %s72 = scalar_select %p71, %s70, 0
    %s73 = smul.u32 2, %s72
    %p74 = scmp.eq.s32.totalorder 0, 0
    // Predicated region
    $region26: #{tpu_custom_call.1} parent=1 // pred_check
      %p75 = pneg %p74
    $region27: #{tpu_custom_call.1} parent=1 // pred_check_branch
      %77 = sbr.rel (%p75) target = $region29
    $region28: #{tpu_custom_call.1} parent=1 // pred_region
      %vm78 = vcmask 130048
      %79 = vst.msk [vmem:[#allocation2] sm:$0xff] %vm78, 0.0
    $region29: #{tpu_custom_call.1} parent=1 // pred_fallthru
      _
    %s80 = sadd.s32 0, 0
    %s81 = smul.u32 %s80, 16
    %s82 = ssub.s32 16, %s81
    %v83 = vlaneseq
    %v84 = vshrl.u32 %v83, 7
    %v85 = vadd.s32 %v84, 8
    %v86 = vstv %s82
    %vm87 = vcmp.lt.s32.totalorder %v84, %v86
    %vm88 = vcmp.lt.s32.totalorder %v85, %v86
    %v89 = vld [vmem:[#allocation6] sm:$0xff]
    %v90 = vld [vmem:[#allocation6 + $0x8] sm:$0xff]
    %v91 = vld [vmem:[#allocation8] sm:$0xff]
    %v92 = vld [vmem:[#allocation8 + $0x8] sm:$0xff]
    %v93 = vsub.f32 %v89, %v91
    %v94 = vsub.f32 %v90, %v92
    %v95 = vsel %vm87, %v93, 0.0
    %v96 = vsel %vm88, %v94, 0.0
    %v97 = vmul.f32 %v95, %v95
    %v98 = vmul.f32 %v96, %v96
    %v99 = vld [vmem:[#allocation2] sm:$0xff]
    %vm100 = vcmask 130048
    %v101 = vsel %vm100, %v97, 0.0
    %v102 = vsel %vm100, %v98, 0.0
    %v103 = vadd.f32 %v101, %v102
    %v104 = vadd.f32 %v99, %v103
    %105 = vst.msk [vmem:[#allocation2] sm:$0xff] %vm100, %v104
    // Predicated region
    $region30: #{tpu_custom_call.1} parent=1 // pred_check
      %p106 = pneg %p74
    $region31: #{tpu_custom_call.1} parent=1 // pred_check_branch
      %108 = sbr.rel (%p106) target = $region33
    $region32: #{tpu_custom_call.1} parent=1 // pred_region
      %v109 = vld [vmem:[#allocation2] sm:$0xff]
      %v110 = vsel %vm100, %v109, 0.0
      %v111 = vrot.slane %v110, 4
      %v112 = vadd.f32 %v110, %v111
      %v113 = vrot.slane %v112, 2
      %v114 = vadd.f32 %v112, %v113
      %v115 = vrot.slane %v114, 1
      %v116 = vadd.f32 %v114, %v115
      %v117 = vld [vmem:[#allocation3] sm:$0x1]
      %v118 = vmul.f32 %v116, %v117
      %vm119 = vcmask 122880
      %v120 = vsel %vm119, %v118, 0.0
      %121 = vadd.xlane.f32.xlu0 %v120
      %v122 = vpop.xlane.xlu0 %121
      %v123 = vrot.slane %v122, 4
      %v124 = vadd.f32 %v122, %v123
      %v125 = vrot.slane %v124, 2
      %v126 = vadd.f32 %v124, %v125
      %v127 = vrot.slane %v126, 1
      %v128 = vadd.f32 %v126, %v127
      %s129 = vtos %v128
      %s130 = smul.f32 %s129, 0.0625
      %v131 = vstv %s130
      %132 = vst [vmem:[#allocation9] sm:$0xff] %v131
    $region33: #{tpu_custom_call.1} parent=1 // pred_fallthru
      _
    // Predicated region
    $region34: #{tpu_custom_call.1} parent=1 // pred_check
      _
    $region35: #{tpu_custom_call.1} parent=1 // pred_check_branch
      %134 = sbr.rel (0) target = $region37
    $region36: #{tpu_custom_call.1} parent=1 // pred_region
      %s136 = ssub.s32 128, 128
      %137 = vsyncadd [#allocation5], %s136
      %s139 = sshll.u32 [#allocation9], 4
      %s140 = int_to_ptr.vmem [resolvable:$true] %s139
      %142 = dma.vmem_to_hbm [thread:$0]  %s140, 128, %s3, [#allocation5]
    $region37: #{tpu_custom_call.1} parent=1 // pred_fallthru
      _
    // Predicated region
    $region38: #{tpu_custom_call.1} parent=1 // pred_check
      _
    $region39: #{tpu_custom_call.1} parent=1 // pred_check_branch
      %144 = sbr.rel (0) target = $region41
    $region40: #{tpu_custom_call.1} parent=1 // pred_region
      %145 = dma.done [#allocation5], 128
    $region41: #{tpu_custom_call.1} parent=1 // pred_fallthru
      _
    %146 = vsyncpa [#allocation4], 1
    %147 = vsyncpa [#allocation7], 1
    %148 = vsyncpa [#allocation5], 1

</llo_original>
